<compile_context>
chip_gen: v5e
topology: v5e:2x2
jax: 0.10.0
libtpu: 0.0.40
codegen_flags: <defaults>
</compile_context>

<pallas_src>
import numpy as np
import jax
import jax.numpy as jnp
from jax.experimental import pallas as pl
from jax.experimental.pallas import tpu as pltpu

# "config" constants from the original module.
SENSORY_VECTOR_SIZE = 16          # config.SENSORY_VECTOR_SIZE
PATTERN_LSTM_HIDDEN_SIZE = 32     # config.PATTERN_LSTM_HIDDEN_SIZE
PATTERN_LSTM_OUTPUT_SIZE = 8      # config.PATTERN_LSTM_OUTPUT_SIZE


def _pattern_lstm_kernel(x_ref, wih_ref, whh_ref, b_ref, wout_ref, bout_ref,
                         out_ref):
    """Whole forward pass in one grid-less kernel invocation.

    x_ref    : [T*Bp, I]  f32  time-major flattened input (row t*Bp+b = x[b, t])
    wih_ref  : [I, 4H]    f32  input->gates weights, gate order (i, f, o, g),
                               i/f/o columns pre-scaled by 0.5
    whh_ref  : [H, 4H]    bf16 hidden->gates weights, same ordering/scaling
    b_ref    : [1, 4H]    f32  fused bias (b_ih + b_hh), same ordering/scaling
    wout_ref : [H, O]     bf16 output-layer weights (pre-transposed)
    bout_ref : [1, O]     f32  output-layer bias
    out_ref  : [Bp, O]    f32  model output (padded batch rows included)
    """
    Bp = out_ref.shape[0]
    H = whh_ref.shape[0]
    T = x_ref.shape[0] // Bp

    whh = whh_ref[...]                       # (H, 4H) bf16, loaded once

    # Hoisted input projection + fused bias: one MXU call, off the serial
    # h->h chain.  f32 x f32 here is tiny and keeps accuracy tight.
    x_proj = (jnp.dot(x_ref[...], wih_ref[...],
                      preferred_element_type=jnp.float32)
              + b_ref[...])                  # (T*Bp, 4H) f32

    # Register-carried LSTM state.
    h = jnp.zeros((Bp, H), jnp.float32)
    c = jnp.zeros((Bp, H), jnp.float32)

    # Statically unrolled recurrence (T = 8 at trace time).  Per step the
    # serial critical path is: 1 bf16 MXU matmul + 1 tanh over (Bp,4H)
    # (covers all three sigmoids via the folded 0.5 pre-scale, exactly)
    # + 1 tanh over (Bp,H) + a few VPU ops.
    for t in range(T):
        gates = (x_proj[t * Bp:(t + 1) * Bp, :]
                 + jnp.dot(h.astype(whh.dtype), whh,
                           preferred_element_type=jnp.float32))   # (Bp, 4H)
        tg = jnp.tanh(gates)                     # single EUP push for all gates
        ifo = 0.5 * (tg[:, :3 * H] + 1.0)        # sigmoid(z) = 0.5*(1+tanh(z/2))
        g = tg[:, 3 * H:]                        # cell candidate (unscaled cols)
        i_g = ifo[:, 0 * H:1 * H]
        f_g = ifo[:, 1 * H:2 * H]
        o_g = ifo[:, 2 * H:3 * H]
        c = f_g * c + i_g * g
        h = o_g * jnp.tanh(c)

    # output_layer(lstm_out[:, -1, :]) == h_T @ W_out^T + b_out
    out_ref[...] = (jnp.dot(h.astype(wout_ref.dtype), wout_ref[...],
                            preferred_element_type=jnp.float32)
                    + bout_ref[...]).astype(out_ref.dtype)


def pack_params(params):
    """One-time parameter preprocessing (call at init, NOT per forward).

    - Reorders PyTorch gate layout (i, f, g, o) -> (i, f, o, g) so the three
      sigmoid gates occupy one contiguous column slab.
    - Folds the 0.5 pre-scale of sigmoid(z) = 0.5*(1+tanh(z/2)) into the
      i/f/o columns of W_ih, W_hh and the fused bias (mathematically exact).
    - Fuses b_ih + b_hh, pre-transposes weights, casts recurrent / output
      weights to bf16 for the MXU.
    """
    H = params["w_hh"].shape[1]
    perm = np.concatenate([np.arange(0 * H, 1 * H),
                           np.arange(1 * H, 2 * H),
                           np.arange(3 * H, 4 * H),
                           np.arange(2 * H, 3 * H)])
    col_scale = np.concatenate([np.full(3 * H, 0.5, np.float32),
                                np.ones(H, np.float32)])

    wih = params["w_ih"][perm] * col_scale[:, None]            # (4H, I)
    whh = params["w_hh"][perm] * col_scale[:, None]            # (4H, H)
    b = (params["b_ih"] + params["b_hh"])[perm] * col_scale    # (4H,)

    return {
        "wih_t": wih.T.astype(jnp.float32),                    # (I, 4H) f32
        "whh_t": whh.T.astype(jnp.bfloat16),                   # (H, 4H) bf16
        "b": b[None, :].astype(jnp.float32),                   # (1, 4H) f32
        "wout_t": params["w_out"].T.astype(jnp.bfloat16),      # (H, O)  bf16
        "bout": params["b_out"][None, :].astype(jnp.float32),  # (1, O)  f32
    }


def pattern_lstm_forward(x, packed):
    """Per-call wrapper: flatten/pad x time-major and run the kernel."""
    B, T, I = x.shape
    O = packed["wout_t"].shape[1]
    Bp = ((B + 7) // 8) * 8                   # pad batch to f32 sublane (8)

    x_tm = jnp.transpose(x, (1, 0, 2))        # (T, B, I) time-major
    if Bp != B:
        x_tm = jnp.pad(x_tm, ((0, 0), (0, Bp - B), (0, 0)))
    x_tm = x_tm.reshape(T * Bp, I).astype(jnp.float32)

    out = pl.pallas_call(
        _pattern_lstm_kernel,
        out_shape=jax.ShapeDtypeStruct((Bp, O), jnp.float32),
        in_specs=[pl.BlockSpec(memory_space=pltpu.MemorySpace.VMEM)] * 6,
        out_specs=pl.BlockSpec(memory_space=pltpu.MemorySpace.VMEM),
    )(x_tm, packed["wih_t"], packed["whh_t"], packed["b"],
      packed["wout_t"], packed["bout"])
    return out[:B]


def reference_forward(x, params):
    """Pure-JAX f32 reference matching PyTorch nn.LSTM + nn.Linear semantics."""
    B, T, I = x.shape
    H = params["w_hh"].shape[1]
    h = jnp.zeros((B, H), jnp.float32)
    c = jnp.zeros((B, H), jnp.float32)
    for t in range(T):
        gates = (x[:, t, :] @ params["w_ih"].T + params["b_ih"]
                 + h @ params["w_hh"].T + params["b_hh"])
        i_g = jax.nn.sigmoid(gates[:, 0 * H:1 * H])
        f_g = jax.nn.sigmoid(gates[:, 1 * H:2 * H])
        g_g = jnp.tanh(gates[:, 2 * H:3 * H])
        o_g = jax.nn.sigmoid(gates[:, 3 * H:4 * H])
        c = f_g * c + i_g * g_g
        h = o_g * jnp.tanh(c)
    return h @ params["w_out"].T + params["b_out"]


def init_params(key, input_size, hidden_size, output_size):
    """Deterministic init; same uniform(-1/sqrt(H), 1/sqrt(H)) scheme as PyTorch."""
    ks = jax.random.split(key, 6)
    k_lstm = 1.0 / jnp.sqrt(hidden_size)
    k_lin = 1.0 / jnp.sqrt(hidden_size)
    u = lambda k, shape, s: jax.random.uniform(k, shape, jnp.float32, -s, s)
    return {
        "w_ih": u(ks[0], (4 * hidden_size, input_size), k_lstm),
        "w_hh": u(ks[1], (4 * hidden_size, hidden_size), k_lstm),
        "b_ih": u(ks[2], (4 * hidden_size,), k_lstm),
        "b_hh": u(ks[3], (4 * hidden_size,), k_lstm),
        "w_out": u(ks[4], (output_size, hidden_size), k_lin),
        "b_out": u(ks[5], (output_size,), k_lin),
    }


if __name__ == "__main__":
    B, T = 2, 8
    I = SENSORY_VECTOR_SIZE
    H = PATTERN_LSTM_HIDDEN_SIZE
    O = PATTERN_LSTM_OUTPUT_SIZE

    key = jax.random.PRNGKey(0)
    kx, kp = jax.random.split(key)
    x = jax.random.normal(kx, (B, T, I), jnp.float32)
    params = init_params(kp, I, H, O)

    # One-time parameter packing (cached); per-call path is just the kernel.
    packed = pack_params(params)
    fwd = jax.jit(pattern_lstm_forward)

    out = fwd(x, packed)
    out = jax.block_until_ready(out)

    ref = reference_forward(x, params)
    assert out.shape == (B, O), out.shape
    # Kernel uses bf16 MXU operands on the recurrent / output matmuls
    # (f32 accumulation); compare against the full-f32 reference with a
    # bf16-appropriate tolerance.
    assert jnp.allclose(out, ref, atol=2e-2, rtol=2e-2), (out, ref)

    print("KERNEL_OK")
</pallas_src>

<mosaic_0001>
module attributes {stable_mosaic.version = 11 : i64} {
  func.func @_pattern_lstm_kernel(%arg0: memref<64x16xf32, #tpu.memory_space<vmem>>, %arg1: memref<16x128xf32, #tpu.memory_space<vmem>>, %arg2: memref<32x128xbf16, #tpu.memory_space<vmem>>, %arg3: memref<1x128xf32, #tpu.memory_space<vmem>>, %arg4: memref<32x8xbf16, #tpu.memory_space<vmem>>, %arg5: memref<1x8xf32, #tpu.memory_space<vmem>>, %arg6: memref<8x8xf32, #tpu.memory_space<vmem>>) attributes {dimension_semantics = [], scalar_prefetch = 0 : i64, scratch_operands = 0 : i64, tpu.core_type = #tpu.core_type<tc>} {
    %c0 = arith.constant 0 : index
    %c0_0 = arith.constant 0 : index
    %0 = vector.load %arg2[%c0, %c0_0] : memref<32x128xbf16, #tpu.memory_space<vmem>>, vector<32x128xbf16>
    %c0_1 = arith.constant 0 : index
    %c0_2 = arith.constant 0 : index
    %1 = vector.load %arg0[%c0_1, %c0_2] : memref<64x16xf32, #tpu.memory_space<vmem>>, vector<64x16xf32>
    %c0_3 = arith.constant 0 : index
    %c0_4 = arith.constant 0 : index
    %2 = vector.load %arg1[%c0_3, %c0_4] : memref<16x128xf32, #tpu.memory_space<vmem>>, vector<16x128xf32>
    %cst = arith.constant dense<0.000000e+00> : vector<64x128xf32>
    %3 = tpu.matmul %1, %2, %cst {dimension_numbers = #tpu.dot_dimension_numbers<[1], [0], [0], [1], [0, 0, 1, 1], [], []>} : vector<64x16xf32>, vector<16x128xf32>, vector<64x128xf32> -> vector<64x128xf32>
    %c0_5 = arith.constant 0 : index
    %c0_6 = arith.constant 0 : index
    %4 = vector.load %arg3[%c0_5, %c0_6] : memref<1x128xf32, #tpu.memory_space<vmem>>, vector<1x128xf32>
    %5 = vector.broadcast %4 : vector<1x128xf32> to vector<64x128xf32>
    %6 = arith.addf %3, %5 : vector<64x128xf32>
    %cst_7 = arith.constant 0.000000e+00 : f32
    %7 = vector.broadcast %cst_7 : f32 to vector<8x32xf32>
    %cst_8 = arith.constant 0.000000e+00 : f32
    %8 = vector.broadcast %cst_8 : f32 to vector<8x32xf32>
    %9 = vector.extract_strided_slice %6 {offsets = [0, 0], sizes = [8, 128], strides = [1, 1]} : vector<64x128xf32> to vector<8x128xf32>
    %10 = arith.truncf %7 : vector<8x32xf32> to vector<8x32xbf16>
    %cst_9 = arith.constant dense<0.000000e+00> : vector<8x128xf32>
    %11 = tpu.matmul %10, %0, %cst_9 {dimension_numbers = #tpu.dot_dimension_numbers<[1], [0], [0], [1], [0, 0, 1, 1], [], []>} : vector<8x32xbf16>, vector<32x128xbf16>, vector<8x128xf32> -> vector<8x128xf32>
    %12 = arith.addf %9, %11 : vector<8x128xf32>
    %13 = math.tanh %12 : vector<8x128xf32>
    %14 = vector.extract_strided_slice %13 {offsets = [0, 0], sizes = [8, 96], strides = [1, 1]} : vector<8x128xf32> to vector<8x96xf32>
    %cst_10 = arith.constant 1.000000e+00 : f32
    %15 = vector.broadcast %cst_10 : f32 to vector<8x96xf32>
    %16 = arith.addf %14, %15 : vector<8x96xf32>
    %cst_11 = arith.constant 5.000000e-01 : f32
    %17 = vector.broadcast %cst_11 : f32 to vector<8x96xf32>
    %18 = arith.mulf %17, %16 : vector<8x96xf32>
    %19 = vector.extract_strided_slice %13 {offsets = [0, 96], sizes = [8, 32], strides = [1, 1]} : vector<8x128xf32> to vector<8x32xf32>
    %20 = vector.extract_strided_slice %18 {offsets = [0, 0], sizes = [8, 32], strides = [1, 1]} : vector<8x96xf32> to vector<8x32xf32>
    %21 = vector.extract_strided_slice %18 {offsets = [0, 32], sizes = [8, 32], strides = [1, 1]} : vector<8x96xf32> to vector<8x32xf32>
    %22 = vector.extract_strided_slice %18 {offsets = [0, 64], sizes = [8, 32], strides = [1, 1]} : vector<8x96xf32> to vector<8x32xf32>
    %23 = arith.mulf %21, %8 : vector<8x32xf32>
    %24 = arith.mulf %20, %19 : vector<8x32xf32>
    %25 = arith.addf %23, %24 : vector<8x32xf32>
    %26 = math.tanh %25 : vector<8x32xf32>
    %27 = arith.mulf %22, %26 : vector<8x32xf32>
    %28 = vector.extract_strided_slice %6 {offsets = [8, 0], sizes = [8, 128], strides = [1, 1]} : vector<64x128xf32> to vector<8x128xf32>
    %29 = arith.truncf %27 : vector<8x32xf32> to vector<8x32xbf16>
    %cst_12 = arith.constant dense<0.000000e+00> : vector<8x128xf32>
    %30 = tpu.matmul %29, %0, %cst_12 {dimension_numbers = #tpu.dot_dimension_numbers<[1], [0], [0], [1], [0, 0, 1, 1], [], []>} : vector<8x32xbf16>, vector<32x128xbf16>, vector<8x128xf32> -> vector<8x128xf32>
    %31 = arith.addf %28, %30 : vector<8x128xf32>
    %32 = math.tanh %31 : vector<8x128xf32>
    %33 = vector.extract_strided_slice %32 {offsets = [0, 0], sizes = [8, 96], strides = [1, 1]} : vector<8x128xf32> to vector<8x96xf32>
    %cst_13 = arith.constant 1.000000e+00 : f32
    %34 = vector.broadcast %cst_13 : f32 to vector<8x96xf32>
    %35 = arith.addf %33, %34 : vector<8x96xf32>
    %cst_14 = arith.constant 5.000000e-01 : f32
    %36 = vector.broadcast %cst_14 : f32 to vector<8x96xf32>
    %37 = arith.mulf %36, %35 : vector<8x96xf32>
    %38 = vector.extract_strided_slice %32 {offsets = [0, 96], sizes = [8, 32], strides = [1, 1]} : vector<8x128xf32> to vector<8x32xf32>
    %39 = vector.extract_strided_slice %37 {offsets = [0, 0], sizes = [8, 32], strides = [1, 1]} : vector<8x96xf32> to vector<8x32xf32>
    %40 = vector.extract_strided_slice %37 {offsets = [0, 32], sizes = [8, 32], strides = [1, 1]} : vector<8x96xf32> to vector<8x32xf32>
    %41 = vector.extract_strided_slice %37 {offsets = [0, 64], sizes = [8, 32], strides = [1, 1]} : vector<8x96xf32> to vector<8x32xf32>
    %42 = arith.mulf %40, %25 : vector<8x32xf32>
    %43 = arith.mulf %39, %38 : vector<8x32xf32>
    %44 = arith.addf %42, %43 : vector<8x32xf32>
    %45 = math.tanh %44 : vector<8x32xf32>
    %46 = arith.mulf %41, %45 : vector<8x32xf32>
    %47 = vector.extract_strided_slice %6 {offsets = [16, 0], sizes = [8, 128], strides = [1, 1]} : vector<64x128xf32> to vector<8x128xf32>
    %48 = arith.truncf %46 : vector<8x32xf32> to vector<8x32xbf16>
    %cst_15 = arith.constant dense<0.000000e+00> : vector<8x128xf32>
    %49 = tpu.matmul %48, %0, %cst_15 {dimension_numbers = #tpu.dot_dimension_numbers<[1], [0], [0], [1], [0, 0, 1, 1], [], []>} : vector<8x32xbf16>, vector<32x128xbf16>, vector<8x128xf32> -> vector<8x128xf32>
    %50 = arith.addf %47, %49 : vector<8x128xf32>
    %51 = math.tanh %50 : vector<8x128xf32>
    %52 = vector.extract_strided_slice %51 {offsets = [0, 0], sizes = [8, 96], strides = [1, 1]} : vector<8x128xf32> to vector<8x96xf32>
    %cst_16 = arith.constant 1.000000e+00 : f32
    %53 = vector.broadcast %cst_16 : f32 to vector<8x96xf32>
    %54 = arith.addf %52, %53 : vector<8x96xf32>
    %cst_17 = arith.constant 5.000000e-01 : f32
    %55 = vector.broadcast %cst_17 : f32 to vector<8x96xf32>
    %56 = arith.mulf %55, %54 : vector<8x96xf32>
    %57 = vector.extract_strided_slice %51 {offsets = [0, 96], sizes = [8, 32], strides = [1, 1]} : vector<8x128xf32> to vector<8x32xf32>
    %58 = vector.extract_strided_slice %56 {offsets = [0, 0], sizes = [8, 32], strides = [1, 1]} : vector<8x96xf32> to vector<8x32xf32>
    %59 = vector.extract_strided_slice %56 {offsets = [0, 32], sizes = [8, 32], strides = [1, 1]} : vector<8x96xf32> to vector<8x32xf32>
    %60 = vector.extract_strided_slice %56 {offsets = [0, 64], sizes = [8, 32], strides = [1, 1]} : vector<8x96xf32> to vector<8x32xf32>
    %61 = arith.mulf %59, %44 : vector<8x32xf32>
    %62 = arith.mulf %58, %57 : vector<8x32xf32>
    %63 = arith.addf %61, %62 : vector<8x32xf32>
    %64 = math.tanh %63 : vector<8x32xf32>
    %65 = arith.mulf %60, %64 : vector<8x32xf32>
    %66 = vector.extract_strided_slice %6 {offsets = [24, 0], sizes = [8, 128], strides = [1, 1]} : vector<64x128xf32> to vector<8x128xf32>
    %67 = arith.truncf %65 : vector<8x32xf32> to vector<8x32xbf16>
    %cst_18 = arith.constant dense<0.000000e+00> : vector<8x128xf32>
    %68 = tpu.matmul %67, %0, %cst_18 {dimension_numbers = #tpu.dot_dimension_numbers<[1], [0], [0], [1], [0, 0, 1, 1], [], []>} : vector<8x32xbf16>, vector<32x128xbf16>, vector<8x128xf32> -> vector<8x128xf32>
    %69 = arith.addf %66, %68 : vector<8x128xf32>
    %70 = math.tanh %69 : vector<8x128xf32>
    %71 = vector.extract_strided_slice %70 {offsets = [0, 0], sizes = [8, 96], strides = [1, 1]} : vector<8x128xf32> to vector<8x96xf32>
    %cst_19 = arith.constant 1.000000e+00 : f32
    %72 = vector.broadcast %cst_19 : f32 to vector<8x96xf32>
    %73 = arith.addf %71, %72 : vector<8x96xf32>
    %cst_20 = arith.constant 5.000000e-01 : f32
    %74 = vector.broadcast %cst_20 : f32 to vector<8x96xf32>
    %75 = arith.mulf %74, %73 : vector<8x96xf32>
    %76 = vector.extract_strided_slice %70 {offsets = [0, 96], sizes = [8, 32], strides = [1, 1]} : vector<8x128xf32> to vector<8x32xf32>
    %77 = vector.extract_strided_slice %75 {offsets = [0, 0], sizes = [8, 32], strides = [1, 1]} : vector<8x96xf32> to vector<8x32xf32>
    %78 = vector.extract_strided_slice %75 {offsets = [0, 32], sizes = [8, 32], strides = [1, 1]} : vector<8x96xf32> to vector<8x32xf32>
    %79 = vector.extract_strided_slice %75 {offsets = [0, 64], sizes = [8, 32], strides = [1, 1]} : vector<8x96xf32> to vector<8x32xf32>
    %80 = arith.mulf %78, %63 : vector<8x32xf32>
    %81 = arith.mulf %77, %76 : vector<8x32xf32>
    %82 = arith.addf %80, %81 : vector<8x32xf32>
    %83 = math.tanh %82 : vector<8x32xf32>
    %84 = arith.mulf %79, %83 : vector<8x32xf32>
    %85 = vector.extract_strided_slice %6 {offsets = [32, 0], sizes = [8, 128], strides = [1, 1]} : vector<64x128xf32> to vector<8x128xf32>
    %86 = arith.truncf %84 : vector<8x32xf32> to vector<8x32xbf16>
    %cst_21 = arith.constant dense<0.000000e+00> : vector<8x128xf32>
    %87 = tpu.matmul %86, %0, %cst_21 {dimension_numbers = #tpu.dot_dimension_numbers<[1], [0], [0], [1], [0, 0, 1, 1], [], []>} : vector<8x32xbf16>, vector<32x128xbf16>, vector<8x128xf32> -> vector<8x128xf32>
    %88 = arith.addf %85, %87 : vector<8x128xf32>
    %89 = math.tanh %88 : vector<8x128xf32>
    %90 = vector.extract_strided_slice %89 {offsets = [0, 0], sizes = [8, 96], strides = [1, 1]} : vector<8x128xf32> to vector<8x96xf32>
    %cst_22 = arith.constant 1.000000e+00 : f32
    %91 = vector.broadcast %cst_22 : f32 to vector<8x96xf32>
    %92 = arith.addf %90, %91 : vector<8x96xf32>
    %cst_23 = arith.constant 5.000000e-01 : f32
    %93 = vector.broadcast %cst_23 : f32 to vector<8x96xf32>
    %94 = arith.mulf %93, %92 : vector<8x96xf32>
    %95 = vector.extract_strided_slice %89 {offsets = [0, 96], sizes = [8, 32], strides = [1, 1]} : vector<8x128xf32> to vector<8x32xf32>
    %96 = vector.extract_strided_slice %94 {offsets = [0, 0], sizes = [8, 32], strides = [1, 1]} : vector<8x96xf32> to vector<8x32xf32>
    %97 = vector.extract_strided_slice %94 {offsets = [0, 32], sizes = [8, 32], strides = [1, 1]} : vector<8x96xf32> to vector<8x32xf32>
    %98 = vector.extract_strided_slice %94 {offsets = [0, 64], sizes = [8, 32], strides = [1, 1]} : vector<8x96xf32> to vector<8x32xf32>
    %99 = arith.mulf %97, %82 : vector<8x32xf32>
    %100 = arith.mulf %96, %95 : vector<8x32xf32>
    %101 = arith.addf %99, %100 : vector<8x32xf32>
    %102 = math.tanh %101 : vector<8x32xf32>
    %103 = arith.mulf %98, %102 : vector<8x32xf32>
    %104 = vector.extract_strided_slice %6 {offsets = [40, 0], sizes = [8, 128], strides = [1, 1]} : vector<64x128xf32> to vector<8x128xf32>
    %105 = arith.truncf %103 : vector<8x32xf32> to vector<8x32xbf16>
    %cst_24 = arith.constant dense<0.000000e+00> : vector<8x128xf32>
    %106 = tpu.matmul %105, %0, %cst_24 {dimension_numbers = #tpu.dot_dimension_numbers<[1], [0], [0], [1], [0, 0, 1, 1], [], []>} : vector<8x32xbf16>, vector<32x128xbf16>, vector<8x128xf32> -> vector<8x128xf32>
    %107 = arith.addf %104, %106 : vector<8x128xf32>
    %108 = math.tanh %107 : vector<8x128xf32>
    %109 = vector.extract_strided_slice %108 {offsets = [0, 0], sizes = [8, 96], strides = [1, 1]} : vector<8x128xf32> to vector<8x96xf32>
    %cst_25 = arith.constant 1.000000e+00 : f32
    %110 = vector.broadcast %cst_25 : f32 to vector<8x96xf32>
    %111 = arith.addf %109, %110 : vector<8x96xf32>
    %cst_26 = arith.constant 5.000000e-01 : f32
    %112 = vector.broadcast %cst_26 : f32 to vector<8x96xf32>
    %113 = arith.mulf %112, %111 : vector<8x96xf32>
    %114 = vector.extract_strided_slice %108 {offsets = [0, 96], sizes = [8, 32], strides = [1, 1]} : vector<8x128xf32> to vector<8x32xf32>
    %115 = vector.extract_strided_slice %113 {offsets = [0, 0], sizes = [8, 32], strides = [1, 1]} : vector<8x96xf32> to vector<8x32xf32>
    %116 = vector.extract_strided_slice %113 {offsets = [0, 32], sizes = [8, 32], strides = [1, 1]} : vector<8x96xf32> to vector<8x32xf32>
    %117 = vector.extract_strided_slice %113 {offsets = [0, 64], sizes = [8, 32], strides = [1, 1]} : vector<8x96xf32> to vector<8x32xf32>
    %118 = arith.mulf %116, %101 : vector<8x32xf32>
    %119 = arith.mulf %115, %114 : vector<8x32xf32>
    %120 = arith.addf %118, %119 : vector<8x32xf32>
    %121 = math.tanh %120 : vector<8x32xf32>
    %122 = arith.mulf %117, %121 : vector<8x32xf32>
    %123 = vector.extract_strided_slice %6 {offsets = [48, 0], sizes = [8, 128], strides = [1, 1]} : vector<64x128xf32> to vector<8x128xf32>
    %124 = arith.truncf %122 : vector<8x32xf32> to vector<8x32xbf16>
    %cst_27 = arith.constant dense<0.000000e+00> : vector<8x128xf32>
    %125 = tpu.matmul %124, %0, %cst_27 {dimension_numbers = #tpu.dot_dimension_numbers<[1], [0], [0], [1], [0, 0, 1, 1], [], []>} : vector<8x32xbf16>, vector<32x128xbf16>, vector<8x128xf32> -> vector<8x128xf32>
    %126 = arith.addf %123, %125 : vector<8x128xf32>
    %127 = math.tanh %126 : vector<8x128xf32>
    %128 = vector.extract_strided_slice %127 {offsets = [0, 0], sizes = [8, 96], strides = [1, 1]} : vector<8x128xf32> to vector<8x96xf32>
    %cst_28 = arith.constant 1.000000e+00 : f32
    %129 = vector.broadcast %cst_28 : f32 to vector<8x96xf32>
    %130 = arith.addf %128, %129 : vector<8x96xf32>
    %cst_29 = arith.constant 5.000000e-01 : f32
    %131 = vector.broadcast %cst_29 : f32 to vector<8x96xf32>
    %132 = arith.mulf %131, %130 : vector<8x96xf32>
    %133 = vector.extract_strided_slice %127 {offsets = [0, 96], sizes = [8, 32], strides = [1, 1]} : vector<8x128xf32> to vector<8x32xf32>
    %134 = vector.extract_strided_slice %132 {offsets = [0, 0], sizes = [8, 32], strides = [1, 1]} : vector<8x96xf32> to vector<8x32xf32>
    %135 = vector.extract_strided_slice %132 {offsets = [0, 32], sizes = [8, 32], strides = [1, 1]} : vector<8x96xf32> to vector<8x32xf32>
    %136 = vector.extract_strided_slice %132 {offsets = [0, 64], sizes = [8, 32], strides = [1, 1]} : vector<8x96xf32> to vector<8x32xf32>
    %137 = arith.mulf %135, %120 : vector<8x32xf32>
    %138 = arith.mulf %134, %133 : vector<8x32xf32>
    %139 = arith.addf %137, %138 : vector<8x32xf32>
    %140 = math.tanh %139 : vector<8x32xf32>
    %141 = arith.mulf %136, %140 : vector<8x32xf32>
    %142 = vector.extract_strided_slice %6 {offsets = [56, 0], sizes = [8, 128], strides = [1, 1]} : vector<64x128xf32> to vector<8x128xf32>
    %143 = arith.truncf %141 : vector<8x32xf32> to vector<8x32xbf16>
    %cst_30 = arith.constant dense<0.000000e+00> : vector<8x128xf32>
    %144 = tpu.matmul %143, %0, %cst_30 {dimension_numbers = #tpu.dot_dimension_numbers<[1], [0], [0], [1], [0, 0, 1, 1], [], []>} : vector<8x32xbf16>, vector<32x128xbf16>, vector<8x128xf32> -> vector<8x128xf32>
    %145 = arith.addf %142, %144 : vector<8x128xf32>
    %146 = math.tanh %145 : vector<8x128xf32>
    %147 = vector.extract_strided_slice %146 {offsets = [0, 0], sizes = [8, 96], strides = [1, 1]} : vector<8x128xf32> to vector<8x96xf32>
    %cst_31 = arith.constant 1.000000e+00 : f32
    %148 = vector.broadcast %cst_31 : f32 to vector<8x96xf32>
    %149 = arith.addf %147, %148 : vector<8x96xf32>
    %cst_32 = arith.constant 5.000000e-01 : f32
    %150 = vector.broadcast %cst_32 : f32 to vector<8x96xf32>
    %151 = arith.mulf %150, %149 : vector<8x96xf32>
    %152 = vector.extract_strided_slice %146 {offsets = [0, 96], sizes = [8, 32], strides = [1, 1]} : vector<8x128xf32> to vector<8x32xf32>
    %153 = vector.extract_strided_slice %151 {offsets = [0, 0], sizes = [8, 32], strides = [1, 1]} : vector<8x96xf32> to vector<8x32xf32>
    %154 = vector.extract_strided_slice %151 {offsets = [0, 32], sizes = [8, 32], strides = [1, 1]} : vector<8x96xf32> to vector<8x32xf32>
    %155 = vector.extract_strided_slice %151 {offsets = [0, 64], sizes = [8, 32], strides = [1, 1]} : vector<8x96xf32> to vector<8x32xf32>
    %156 = arith.mulf %154, %139 : vector<8x32xf32>
    %157 = arith.mulf %153, %152 : vector<8x32xf32>
    %158 = arith.addf %156, %157 : vector<8x32xf32>
    %159 = math.tanh %158 : vector<8x32xf32>
    %160 = arith.mulf %155, %159 : vector<8x32xf32>
    %161 = arith.truncf %160 : vector<8x32xf32> to vector<8x32xbf16>
    %c0_33 = arith.constant 0 : index
    %c0_34 = arith.constant 0 : index
    %162 = vector.load %arg4[%c0_33, %c0_34] : memref<32x8xbf16, #tpu.memory_space<vmem>>, vector<32x8xbf16>
    %cst_35 = arith.constant dense<0.000000e+00> : vector<8x8xf32>
    %163 = tpu.matmul %161, %162, %cst_35 {dimension_numbers = #tpu.dot_dimension_numbers<[1], [0], [0], [1], [0, 0, 1, 1], [], []>} : vector<8x32xbf16>, vector<32x8xbf16>, vector<8x8xf32> -> vector<8x8xf32>
    %c0_36 = arith.constant 0 : index
    %c0_37 = arith.constant 0 : index
    %164 = vector.load %arg5[%c0_36, %c0_37] : memref<1x8xf32, #tpu.memory_space<vmem>>, vector<1x8xf32>
    %165 = vector.broadcast %164 : vector<1x8xf32> to vector<8x8xf32>
    %166 = arith.addf %163, %165 : vector<8x8xf32>
    %c0_38 = arith.constant 0 : index
    %c0_39 = arith.constant 0 : index
    %167 = vector.load %arg6[%c0_38, %c0_39] : memref<8x8xf32, #tpu.memory_space<vmem>>, vector<8x8xf32>
    tpu.vector_store %arg6[%c0_38, %c0_39], %166 {strides = array<i32>} : memref<8x8xf32, #tpu.memory_space<vmem>>, vector<8x8xf32>,
    return
  }
}

</mosaic_0001>

<llo_original>
// kernel: pattern_lstm_forward.1
$region0: #{pattern_lstm_forward.1}
  #allocation0 [shape = 'u32[]', space=smem, size = 0x4, offset = 0x4, fixed_abs, tag = 'smem constant byte address 0x4 - core index']
  #allocation1 [shape = 'u32[72,128]{1,0:T(1,128)}', space=vmem, size = 0x9000, scoped, tag = 'internal scratch']
  %s0 = inlined_call_operand.vmem [shape: f32[64,16], index: 0, kind: input, shape index: {}]
  %s1 = inlined_call_operand.vmem [shape: f32[16,128], index: 1, kind: input, shape index: {}]
  %s2 = inlined_call_operand.vmem [shape: bf16[32,128], index: 2, kind: input, shape index: {}]
  %s3 = inlined_call_operand.vmem [shape: f32[1,128], index: 3, kind: input, shape index: {}]
  %s4 = inlined_call_operand.vmem [shape: bf16[32,8], index: 4, kind: input, shape index: {}]
  %s5 = inlined_call_operand.vmem [shape: f32[1,8], index: 5, kind: input, shape index: {}]
  %s6 = inlined_call_operand.vmem [shape: f32[8,8], index: 6, kind: output, shape index: {}]
  %s7 = sld [smem:[#allocation0]]
  $region34: #{pattern_lstm_forward.1} parent=0
    _
  %s9 = ssub.s32 1, %s7
  %s10 = scalar_select 0, %s9, %s7
  // Predicated region
  $region2: #{pattern_lstm_forward.1} parent=0 // pred_check
    _
  $region3: #{pattern_lstm_forward.1} parent=0 // pred_check_branch
    %12 = sbr.rel (0) target = $region5
  $region4: #{pattern_lstm_forward.1} parent=0 // pred_region
    _
  $region5: #{pattern_lstm_forward.1} parent=0 // pred_fallthru
    _
  // Predicated region
  $region6: #{pattern_lstm_forward.1} parent=0 // pred_check
    _
  $region7: #{pattern_lstm_forward.1} parent=0 // pred_check_branch
    %14 = sbr.rel (0) target = $region9
  $region8: #{pattern_lstm_forward.1} parent=0 // pred_region
    _
  $region9: #{pattern_lstm_forward.1} parent=0 // pred_fallthru
    _
  // Predicated region
  $region10: #{pattern_lstm_forward.1} parent=0 // pred_check
    _
  $region11: #{pattern_lstm_forward.1} parent=0 // pred_check_branch
    %16 = sbr.rel (0) target = $region13
  $region12: #{pattern_lstm_forward.1} parent=0 // pred_region
    _
  $region13: #{pattern_lstm_forward.1} parent=0 // pred_fallthru
    _
  // Predicated region
  $region14: #{pattern_lstm_forward.1} parent=0 // pred_check
    _
  $region15: #{pattern_lstm_forward.1} parent=0 // pred_check_branch
    %18 = sbr.rel (0) target = $region17
  $region16: #{pattern_lstm_forward.1} parent=0 // pred_region
    _
  $region17: #{pattern_lstm_forward.1} parent=0 // pred_fallthru
    _
  // Predicated region
  $region18: #{pattern_lstm_forward.1} parent=0 // pred_check
    _
  $region19: #{pattern_lstm_forward.1} parent=0 // pred_check_branch
    %20 = sbr.rel (0) target = $region21
  $region20: #{pattern_lstm_forward.1} parent=0 // pred_region
    _
  $region21: #{pattern_lstm_forward.1} parent=0 // pred_fallthru
    _
  // Predicated region
  $region22: #{pattern_lstm_forward.1} parent=0 // pred_check
    _
  $region23: #{pattern_lstm_forward.1} parent=0 // pred_check_branch
    %22 = sbr.rel (0) target = $region25
  $region24: #{pattern_lstm_forward.1} parent=0 // pred_region
    _
  $region25: #{pattern_lstm_forward.1} parent=0 // pred_fallthru
    _
  %v24 = vld [vmem:[%s2] sm:$0xf]
  %v25 = vld [vmem:[%s2 + $0x4] sm:$0xf]
  %v26 = vld [vmem:[%s2 + $0x8] sm:$0xf]
  %v27 = vld [vmem:[%s2 + $0xc] sm:$0xf]
  %v28 = vld [vmem:[%s0] sm:$0xff]
  %v29 = vld [vmem:[%s0 + $0x8] sm:$0xff]
  %v30 = vld [vmem:[%s0 + $0x10] sm:$0xff]
  %v31 = vld [vmem:[%s0 + $0x18] sm:$0xff]
  %v32 = vld [vmem:[%s0 + $0x20] sm:$0xff]
  %v33 = vld [vmem:[%s0 + $0x28] sm:$0xff]
  %v34 = vld [vmem:[%s0 + $0x30] sm:$0xff]
  %v35 = vld [vmem:[%s0 + $0x38] sm:$0xff]
  %v36 = vld [vmem:[%s1] sm:$0xff]
  %v37 = vld [vmem:[%s1 + $0x8] sm:$0xff]
  %v38 = vld [vmem:[%s3] sm:$0x1]
  %v40 = vperm.slane %v38, 0
  %vm42 = vcmask 130048
  %v44 = vsel %vm42, %v28, 0
  %v47 = vsel %vm42, %v29, 0
  %v50 = vsel %vm42, %v30, 0
  %v53 = vsel %vm42, %v31, 0
  %v56 = vsel %vm42, %v32, 0
  %v59 = vsel %vm42, %v33, 0
  %v62 = vsel %vm42, %v34, 0
  %v65 = vsel %vm42, %v35, 0
  %67 = vmatpush.msra.mxu0 0.0
  %68 = vmatpush.msra.mxu0 0.0
  %69 = vmatpush.msra.mxu0 0.0
  %70 = vmatpush.msra.mxu0 0.0
  %71 = vmatpush.msra.mxu0 0.0
  %72 = vmatpush.msra.mxu0 0.0
  %73 = vmatpush.msra.mxu0 0.0
  %74 = vmatpush.msra.mxu0 0.0
  %75 = vmatpush.msra.mxu0 0.0
  %76 = vmatpush.msra.mxu0 0.0
  %77 = vmatpush.msra.mxu0 0.0
  %78 = vmatpush.msra.mxu0 0.0
  %79 = vmatpush.msra.mxu0 0.0
  %80 = vmatpush.msra.mxu0 0.0
  %81 = vmatpush.msra.mxu0 %v37
  %82 = vmatpush.msra.mxu0 %v36
  %83 = vmatmul.f32.gmra.mxu0 %v44
  %v84 = vpop.f32.mrf.mxu0
  %v85 = vadd.f32 %v40, %v84
  %86 = vmatmul.f32.gmra.mxu0 %v47
  %v87 = vpop.f32.mrf.mxu0
  %v88 = vadd.f32 %v40, %v87
  %89 = vmatmul.f32.gmra.mxu0 %v50
  %v90 = vpop.f32.mrf.mxu0
  %v91 = vadd.f32 %v40, %v90
  %92 = vmatmul.f32.gmra.mxu0 %v53
  %v93 = vpop.f32.mrf.mxu0
  %v94 = vadd.f32 %v40, %v93
  %95 = vmatmul.f32.gmra.mxu0 %v56
  %v96 = vpop.f32.mrf.mxu0
  %v97 = vadd.f32 %v40, %v96
  %98 = vmatmul.f32.gmra.mxu0 %v59
  %v99 = vpop.f32.mrf.mxu0
  %v100 = vadd.f32 %v40, %v99
  %101 = vmatmul.f32.gmra.mxu0 %v62
  %v102 = vpop.f32.mrf.mxu0
  %v103 = vadd.f32 %v40, %v102
  %104 = vmatmul.f32.gmra.mxu0 %v65
  %v105 = vpop.f32.mrf.mxu0
  %v106 = vadd.f32 %v40, %v105
  %107 = vdwg.mxu0
  %v112 = vunpack.c.l.b16 %v24
  %v113 = vunpack.c.l.b16 %v25
  %v114 = vunpack.c.l.b16 %v26
  %v115 = vunpack.c.l.b16 %v27
  %v116 = vpack.c.b16 %v113, %v112
  %v117 = vpack.c.b16 %v115, %v114
  %vm120 = vcmask 261120
  %v122 = vsel %vm120, 0, 0
  %124 = vmatpush.bf16.msra.mxu0 0
  %125 = vmatpush.bf16.msra.mxu0 0
  %126 = vmatpush.bf16.msra.mxu0 0
  %127 = vmatpush.bf16.msra.mxu0 0
  %128 = vmatpush.bf16.msra.mxu0 0
  %129 = vmatpush.bf16.msra.mxu0 0
  %130 = vmatpush.bf16.msra.mxu0 %v117
  %131 = vmatpush.bf16.msra.mxu0 %v116
  %132 = vmatmul.bf16.gmra.mxu0 %v122
  %v133 = vpop.f32.mrf.mxu0
  %v134 = vadd.f32 0.0, %v133
  %v135 = vpop.f32.mrf.mxu0
  %136 = vdwg.mxu0
  %v137 = vadd.f32 %v85, %v134
  %v138 = vtanh.pop %v137
  %v139 = vadd.f32 %v138, 1.0
  %v140 = vmul.f32 %v139, 0.5
  %v141 = vmul.f32 %v140, 0.0
  %143 = vrot.lane.b32.xlu0 %v138, 32
  %v144 = vpop.permute.xlu0 %143
  %v146 = vmul.f32 %v140, %v144
  %148 = vrot.lane.b32.xlu0 %v146, 32
  %v149 = vpop.permute.xlu0 %148
  %v151 = vadd.f32 %v141, %v149
  %v152 = vtanh.pop %v151
  %154 = vrot.lane.b32.xlu0 %v152, 32
  %v155 = vpop.permute.xlu0 %154
  %v157 = vmul.f32 %v140, %v155
  %v158 = vpack.c.bf16 %v157, %v157
  %160 = vrot.lane.b32.xlu0 %v158, 64
  %v161 = vpop.permute.xlu0 %160
  %v163 = vsel %vm120, %v161, 0
  %165 = vmatpush.bf16.msra.mxu0 0
  %166 = vmatpush.bf16.msra.mxu0 0
  %167 = vmatpush.bf16.msra.mxu0 0
  %168 = vmatpush.bf16.msra.mxu0 0
  %169 = vmatpush.bf16.msra.mxu0 0
  %170 = vmatpush.bf16.msra.mxu0 0
  %171 = vmatpush.bf16.msra.mxu0 %v117
  %172 = vmatpush.bf16.msra.mxu0 %v116
  %173 = vmatmul.bf16.gmra.mxu0 %v163
  %v174 = vpop.f32.mrf.mxu0
  %v175 = vadd.f32 0.0, %v174
  %v176 = vpop.f32.mrf.mxu0
  %177 = vdwg.mxu0
  %v178 = vadd.f32 %v88, %v175
  %v179 = vtanh.pop %v178
  %v180 = vadd.f32 %v179, 1.0
  %v181 = vmul.f32 %v180, 0.5
  %v182 = vmul.f32 %v181, %v151
  %184 = vrot.lane.b32.xlu0 %v179, 32
  %v185 = vpop.permute.xlu0 %184
  %v187 = vmul.f32 %v181, %v185
  %189 = vrot.lane.b32.xlu0 %v187, 32
  %v190 = vpop.permute.xlu0 %189
  %v192 = vadd.f32 %v182, %v190
  %v193 = vtanh.pop %v192
  %195 = vrot.lane.b32.xlu0 %v193, 32
  %v196 = vpop.permute.xlu0 %195
  %v198 = vmul.f32 %v181, %v196
  %v199 = vpack.c.bf16 %v198, %v198
  %201 = vrot.lane.b32.xlu0 %v199, 64
  %v202 = vpop.permute.xlu0 %201
  %v204 = vsel %vm120, %v202, 0
  %206 = vmatpush.bf16.msra.mxu0 0
  %207 = vmatpush.bf16.msra.mxu0 0
  %208 = vmatpush.bf16.msra.mxu0 0
  %209 = vmatpush.bf16.msra.mxu0 0
  %210 = vmatpush.bf16.msra.mxu0 0
  %211 = vmatpush.bf16.msra.mxu0 0
  %212 = vmatpush.bf16.msra.mxu0 %v117
  %213 = vmatpush.bf16.msra.mxu0 %v116
  %214 = vmatmul.bf16.gmra.mxu0 %v204
  %v215 = vpop.f32.mrf.mxu0
  %v216 = vadd.f32 0.0, %v215
  %v217 = vpop.f32.mrf.mxu0
  %218 = vdwg.mxu0
  %v219 = vadd.f32 %v91, %v216
  %v220 = vtanh.pop %v219
  %v221 = vadd.f32 %v220, 1.0
  %v222 = vmul.f32 %v221, 0.5
  %v223 = vmul.f32 %v222, %v192
  %225 = vrot.lane.b32.xlu0 %v220, 32
  %v226 = vpop.permute.xlu0 %225
  %v228 = vmul.f32 %v222, %v226
  %230 = vrot.lane.b32.xlu0 %v228, 32
  %v231 = vpop.permute.xlu0 %230
  %v233 = vadd.f32 %v223, %v231
  %v234 = vtanh.pop %v233
  %236 = vrot.lane.b32.xlu0 %v234, 32
  %v237 = vpop.permute.xlu0 %236
  %v239 = vmul.f32 %v222, %v237
  %v240 = vpack.c.bf16 %v239, %v239
  %242 = vrot.lane.b32.xlu0 %v240, 64
  %v243 = vpop.permute.xlu0 %242
  %v245 = vsel %vm120, %v243, 0
  %247 = vmatpush.bf16.msra.mxu0 0
  %248 = vmatpush.bf16.msra.mxu0 0
  %249 = vmatpush.bf16.msra.mxu0 0
  %250 = vmatpush.bf16.msra.mxu0 0
  %251 = vmatpush.bf16.msra.mxu0 0
  %252 = vmatpush.bf16.msra.mxu0 0
  %253 = vmatpush.bf16.msra.mxu0 %v117
  %254 = vmatpush.bf16.msra.mxu0 %v116
  %255 = vmatmul.bf16.gmra.mxu0 %v245
  %v256 = vpop.f32.mrf.mxu0
  %v257 = vadd.f32 0.0, %v256
  %v258 = vpop.f32.mrf.mxu0
  %259 = vdwg.mxu0
  %v260 = vadd.f32 %v94, %v257
  %v261 = vtanh.pop %v260
  %v262 = vadd.f32 %v261, 1.0
  %v263 = vmul.f32 %v262, 0.5
  %v264 = vmul.f32 %v263, %v233
  %266 = vrot.lane.b32.xlu0 %v261, 32
  %v267 = vpop.permute.xlu0 %266
  %v269 = vmul.f32 %v263, %v267
  %271 = vrot.lane.b32.xlu0 %v269, 32
  %v272 = vpop.permute.xlu0 %271
  %v274 = vadd.f32 %v264, %v272
  %v275 = vtanh.pop %v274
  %277 = vrot.lane.b32.xlu0 %v275, 32
  %v278 = vpop.permute.xlu0 %277
  %v280 = vmul.f32 %v263, %v278
  %v281 = vpack.c.bf16 %v280, %v280
  %283 = vrot.lane.b32.xlu0 %v281, 64
  %v284 = vpop.permute.xlu0 %283
  %v286 = vsel %vm120, %v284, 0
  %288 = vmatpush.bf16.msra.mxu0 0
  %289 = vmatpush.bf16.msra.mxu0 0
  %290 = vmatpush.bf16.msra.mxu0 0
  %291 = vmatpush.bf16.msra.mxu0 0
  %292 = vmatpush.bf16.msra.mxu0 0
  %293 = vmatpush.bf16.msra.mxu0 0
  %294 = vmatpush.bf16.msra.mxu0 %v117
  %295 = vmatpush.bf16.msra.mxu0 %v116
  %296 = vmatmul.bf16.gmra.mxu0 %v286
  %v297 = vpop.f32.mrf.mxu0
  %v298 = vadd.f32 0.0, %v297
  %v299 = vpop.f32.mrf.mxu0
  %300 = vdwg.mxu0
  %v301 = vadd.f32 %v97, %v298
  %v302 = vtanh.pop %v301
  %v303 = vadd.f32 %v302, 1.0
  %v304 = vmul.f32 %v303, 0.5
  %v305 = vmul.f32 %v304, %v274
  %307 = vrot.lane.b32.xlu0 %v302, 32
  %v308 = vpop.permute.xlu0 %307
  %v310 = vmul.f32 %v304, %v308
  %312 = vrot.lane.b32.xlu0 %v310, 32
  %v313 = vpop.permute.xlu0 %312
  %v315 = vadd.f32 %v305, %v313
  %v316 = vtanh.pop %v315
  %318 = vrot.lane.b32.xlu0 %v316, 32
  %v319 = vpop.permute.xlu0 %318
  %v321 = vmul.f32 %v304, %v319
  %v322 = vpack.c.bf16 %v321, %v321
  %324 = vrot.lane.b32.xlu0 %v322, 64
  %v325 = vpop.permute.xlu0 %324
  %v327 = vsel %vm120, %v325, 0
  %329 = vmatpush.bf16.msra.mxu0 0
  %330 = vmatpush.bf16.msra.mxu0 0
  %331 = vmatpush.bf16.msra.mxu0 0
  %332 = vmatpush.bf16.msra.mxu0 0
  %333 = vmatpush.bf16.msra.mxu0 0
  %334 = vmatpush.bf16.msra.mxu0 0
  %335 = vmatpush.bf16.msra.mxu0 %v117
  %336 = vmatpush.bf16.msra.mxu0 %v116
  %337 = vmatmul.bf16.gmra.mxu0 %v327
  %v338 = vpop.f32.mrf.mxu0
  %v339 = vadd.f32 0.0, %v338
  %v340 = vpop.f32.mrf.mxu0
  %341 = vdwg.mxu0
  %v342 = vadd.f32 %v100, %v339
  %v343 = vtanh.pop %v342
  %v344 = vadd.f32 %v343, 1.0
  %v345 = vmul.f32 %v344, 0.5
  %v346 = vmul.f32 %v345, %v315
  %348 = vrot.lane.b32.xlu0 %v343, 32
  %v349 = vpop.permute.xlu0 %348
  %v351 = vmul.f32 %v345, %v349
  %353 = vrot.lane.b32.xlu0 %v351, 32
  %v354 = vpop.permute.xlu0 %353
  %v356 = vadd.f32 %v346, %v354
  %v357 = vtanh.pop %v356
  %359 = vrot.lane.b32.xlu0 %v357, 32
  %v360 = vpop.permute.xlu0 %359
  %v362 = vmul.f32 %v345, %v360
  %v363 = vpack.c.bf16 %v362, %v362
  %365 = vrot.lane.b32.xlu0 %v363, 64
  %v366 = vpop.permute.xlu0 %365
  %v368 = vsel %vm120, %v366, 0
  %370 = vmatpush.bf16.msra.mxu0 0
  %371 = vmatpush.bf16.msra.mxu0 0
  %372 = vmatpush.bf16.msra.mxu0 0
  %373 = vmatpush.bf16.msra.mxu0 0
  %374 = vmatpush.bf16.msra.mxu0 0
  %375 = vmatpush.bf16.msra.mxu0 0
  %376 = vmatpush.bf16.msra.mxu0 %v117
  %377 = vmatpush.bf16.msra.mxu0 %v116
  %378 = vmatmul.bf16.gmra.mxu0 %v368
  %v379 = vpop.f32.mrf.mxu0
  %v380 = vadd.f32 0.0, %v379
  %v381 = vpop.f32.mrf.mxu0
  %382 = vdwg.mxu0
  %v383 = vadd.f32 %v103, %v380
  %v384 = vtanh.pop %v383
  %v385 = vadd.f32 %v384, 1.0
  %v386 = vmul.f32 %v385, 0.5
  %v387 = vmul.f32 %v386, %v356
  %389 = vrot.lane.b32.xlu0 %v384, 32
  %v390 = vpop.permute.xlu0 %389
  %v392 = vmul.f32 %v386, %v390
  %394 = vrot.lane.b32.xlu0 %v392, 32
  %v395 = vpop.permute.xlu0 %394
  %v397 = vadd.f32 %v387, %v395
  %v398 = vtanh.pop %v397
  %400 = vrot.lane.b32.xlu0 %v398, 32
  %v401 = vpop.permute.xlu0 %400
  %v403 = vmul.f32 %v386, %v401
  %v404 = vpack.c.bf16 %v403, %v403
  %406 = vrot.lane.b32.xlu0 %v404, 64
  %v407 = vpop.permute.xlu0 %406
  %v409 = vsel %vm120, %v407, 0
  %411 = vmatpush.bf16.msra.mxu0 0
  %412 = vmatpush.bf16.msra.mxu0 0
  %413 = vmatpush.bf16.msra.mxu0 0
  %414 = vmatpush.bf16.msra.mxu0 0
  %415 = vmatpush.bf16.msra.mxu0 0
  %416 = vmatpush.bf16.msra.mxu0 0
  %417 = vmatpush.bf16.msra.mxu0 %v117
  %418 = vmatpush.bf16.msra.mxu0 %v116
  %419 = vmatmul.bf16.gmra.mxu0 %v409
  %v420 = vpop.f32.mrf.mxu0
  %v421 = vadd.f32 0.0, %v420
  %v422 = vpop.f32.mrf.mxu0
  %423 = vdwg.mxu0
  %v424 = vadd.f32 %v106, %v421
  %v425 = vtanh.pop %v424
  %v426 = vadd.f32 %v425, 1.0
  %v427 = vmul.f32 %v426, 0.5
  %v428 = vmul.f32 %v427, %v397
  %430 = vrot.lane.b32.xlu0 %v425, 32
  %v431 = vpop.permute.xlu0 %430
  %v433 = vmul.f32 %v427, %v431
  %435 = vrot.lane.b32.xlu0 %v433, 32
  %v436 = vpop.permute.xlu0 %435
  %v438 = vadd.f32 %v428, %v436
  %v439 = vtanh.pop %v438
  %441 = vrot.lane.b32.xlu0 %v439, 32
  %v442 = vpop.permute.xlu0 %441
  %v444 = vmul.f32 %v427, %v442
  %v445 = vpack.c.bf16 %v444, %v444
  %v446 = vld [vmem:[%s4] sm:$0xf]
  %v447 = vld [vmem:[%s4 + $0x4] sm:$0xf]
  %v448 = vld [vmem:[%s4 + $0x8] sm:$0xf]
  %v449 = vld [vmem:[%s4 + $0xc] sm:$0xf]
  %v450 = vld [vmem:[%s5] sm:$0x1]
  %v452 = vperm.slane %v450, 0
  %455 = vrot.lane.b32.xlu0 %v445, 64
  %v456 = vpop.permute.xlu0 %455
  %v461 = vunpack.c.l.b16 %v446
  %v462 = vunpack.c.l.b16 %v447
  %v463 = vunpack.c.l.b16 %v448
  %v464 = vunpack.c.l.b16 %v449
  %v465 = vpack.c.b16 %v462, %v461
  %v466 = vpack.c.b16 %v464, %v463
  %v470 = vsel %vm120, %v456, 0
  %472 = vmatpush.bf16.msra.mxu0 0
  %473 = vmatpush.bf16.msra.mxu0 0
  %474 = vmatpush.bf16.msra.mxu0 0
  %475 = vmatpush.bf16.msra.mxu0 0
  %476 = vmatpush.bf16.msra.mxu0 0
  %477 = vmatpush.bf16.msra.mxu0 0
  %478 = vmatpush.bf16.msra.mxu0 %v466
  %479 = vmatpush.bf16.msra.mxu0 %v465
  %480 = vmatmul.bf16.gmra.mxu0 %v470
  %v481 = vpop.f32.mrf.mxu0
  %v482 = vadd.f32 %v452, %v481
  %v483 = vpop.f32.mrf.mxu0
  %484 = vdwg.mxu0
  %vm485 = vcmask 64512
  %486 = vst.msk [vmem:[%s6] sm:$0xff] %vm485, %v482
  // Predicated region
  $region26: #{pattern_lstm_forward.1} parent=0 // pred_check
    _
  $region27: #{pattern_lstm_forward.1} parent=0 // pred_check_branch
    %488 = sbr.rel (0) target = $region29
  $region28: #{pattern_lstm_forward.1} parent=0 // pred_region
    _
  $region29: #{pattern_lstm_forward.1} parent=0 // pred_fallthru
    _
  // Predicated region
  $region30: #{pattern_lstm_forward.1} parent=0 // pred_check
    _
  $region31: #{pattern_lstm_forward.1} parent=0 // pred_check_branch
    %490 = sbr.rel (0) target = $region33
  $region32: #{pattern_lstm_forward.1} parent=0 // pred_region
    _
  $region33: #{pattern_lstm_forward.1} parent=0 // pred_fallthru
    _

</llo_original>
